<compile_context>
chip_gen: v7x
topology: tpu7x:2x2x1
jax: 0.10.0
libtpu: 0.0.40
codegen_flags: <defaults>
</compile_context>

<pallas_src>
import functools

import jax
import jax.numpy as jnp
from jax.experimental import pallas as pl
from jax.experimental.pallas import tpu as pltpu


# ~0.5M input elements per grid block: big enough that the ~0.35 us per-grid-step
# overhead is amortized (>=85% of HBM roofline in measured Pallas sweeps), small
# enough that the handful of live full-tile f32 temporaries of the element math
# stay comfortably inside the scoped-VMEM budget on every chip.
_TARGET_BLOCK_ELEMS = 512 * 1024
_VMEM_LIMIT_BYTES = 48 * 1024 * 1024


def _static_pow(y, exponent):
    """y ** exponent for a trace-time-static exponent.

    Integral exponents lower to a VALU multiply chain (no EUP transcendental);
    exponent 1.0 is the identity; anything else falls back to jnp.power.
    """
    e = float(exponent)
    if e == 1.0:
        return y
    if e == float(int(e)) and int(e) >= 1:
        n = int(e)
        result = None
        base = y
        while n > 0:
            if n & 1:
                result = base if result is None else result * base
            n >>= 1
            if n:
                base = base * base
        return result
    return jnp.power(y, e)


def _sigmoid_pieces(x, approx_recip):
    """Stable sigmoid/softplus pieces from one exp + one log per element.

    Returns (p, one_minus_p, log1pe, softplus_pos):
      p            = sigmoid(x)
      one_minus_p  = sigmoid(-x)
      log1pe       = log(1 + exp(-|x|))
      softplus_pos = softplus(x)  = -log(1 - p)    (exact, no cancellation)
    softplus(-x) = -log(p) = log1pe + max(-x, 0) is formed by the caller.
    """
    e = jnp.exp(-jnp.abs(x))                        # in (0, 1]
    one_plus_e = 1.0 + e
    if approx_recip:
        dinv = pl.reciprocal(one_plus_e, approx=True)   # EUP push, frees VALU slot
    else:
        dinv = 1.0 / one_plus_e
    e_dinv = e * dinv
    p = jnp.where(x >= 0.0, dinv, e_dinv)
    one_minus_p = jnp.where(x >= 0.0, e_dinv, dinv)
    log1pe = jnp.log(one_plus_e)
    softplus_pos = log1pe + jnp.maximum(x, 0.0)
    return p, one_minus_p, log1pe, softplus_pos


def _focal_rowtile_kernel(x_ref, t_ref, out_ref, *, gamma, gamma_p, alpha,
                          batch, num_classes, tile_rows, approx_recip):
    """Fallback path: one grid step processes (tile_rows, C) logits."""
    x = x_ref[...].astype(jnp.float32)              # (TB, C) logits
    t = t_ref[...]                                  # (TB, 1) int32 labels
    tb, c = x.shape

    col = jax.lax.broadcasted_iota(jnp.int32, (tb, c), 1)
    is_tgt = col == t                               # bool mask (never an f32 one-hot)

    p, one_minus_p, log1pe, softplus_pos = _sigmoid_pieces(x, approx_recip)

    # Negative branch over the full tile (target column zeroed):
    #   fl_n = p**gamma * softplus(x)   [= -(p**gamma) * log(1-p)]
    fl_n = jnp.where(is_tgt, 0.0, _static_pow(p, gamma) * softplus_pos)
    neg_rowsum = jnp.sum(fl_n, axis=-1, keepdims=True)           # (TB, 1)

    # Positive branch: gather the target-column pieces from the already-computed
    # full-tile intermediates via masked row-sums (XLU), then finish with pure VALU
    # ops on the (TB, 1) column -- no second exp/log/divide chain on a 1/128-lane
    # column.  Rows whose label matches no column (e.g. ignore index) gather exact
    # zeros and add no positive term.
    x_t = jnp.sum(jnp.where(is_tgt, x, 0.0), axis=-1, keepdims=True)
    log1pe_t = jnp.sum(jnp.where(is_tgt, log1pe, 0.0), axis=-1, keepdims=True)
    one_minus_pt = jnp.sum(jnp.where(is_tgt, one_minus_p, 0.0), axis=-1,
                           keepdims=True)
    softplus_neg_t = log1pe_t + jnp.maximum(-x_t, 0.0)            # -log(p_t), exact
    fl_p = _static_pow(one_minus_pt, gamma_p) * softplus_neg_t    # (TB, 1)

    scale_n = 10.0 / (batch * num_classes)
    scale_p = alpha * 0.1 / batch
    row_total = neg_rowsum * scale_n + fl_p * scale_p             # (TB, 1)

    # Ragged trailing block (no wrapper-side pad): mask the (TB, 1) row totals only.
    if batch % tile_rows != 0:
        row = (jax.lax.broadcasted_iota(jnp.int32, (tb, 1), 0)
               + pl.program_id(0) * tile_rows)
        row_total = jnp.where(row < batch, row_total, 0.0)

    out_ref[...] = jnp.broadcast_to(jnp.sum(row_total), (8, 128))


def _focal_lanepacked_kernel(x_ref, t_ref, out_ref, *, gamma, gamma_p, alpha,
                             batch, num_classes, num_packed_rows, tile_rows,
                             approx_recip):
    """Lane-dense path: one grid step processes (tile_rows, 128) flat logits."""
    x = x_ref[...].astype(jnp.float32)              # (TR, 128) lane-dense logits
    t = t_ref[...]                                  # (TR, G) int32, G = 128 // C
    tr = x.shape[0]
    c = num_classes
    groups = 128 // c
    log2c = c.bit_length() - 1                      # C is a power of two here

    lane = jax.lax.broadcasted_iota(jnp.int32, (tr, 128), 1)
    group = lane >> log2c                           # original row within the lane row
    cls = lane & (c - 1)                            # class/column index of the lane

    # Expand the (TR, G) per-row targets across their C-lane groups with a short
    # select chain; the `group == g` masks are compile-time constants.
    t_exp = jnp.where(group == 0, t[:, 0:1], 0)
    for g in range(1, groups):
        t_exp = jnp.where(group == g, t[:, g:g + 1], t_exp)
    is_tgt = cls == t_exp

    p, one_minus_p, log1pe, softplus_pos = _sigmoid_pieces(x, approx_recip)
    softplus_neg = log1pe + jnp.maximum(-x, 0.0)    # -log(p), exact (no cancellation)

    scale_n = 10.0 / (batch * num_classes)
    scale_p = alpha * 0.1 / batch
    fl_n = _static_pow(p, gamma) * softplus_pos * scale_n
    fl_p = _static_pow(one_minus_p, gamma_p) * softplus_neg * scale_p
    contrib = jnp.where(is_tgt, fl_p, fl_n)         # (TR, 128)

    row_total = jnp.sum(contrib, axis=-1, keepdims=True)          # (TR, 1)
    # Ragged trailing block of the packed view: mask whole OOB packed rows.
    if num_packed_rows % tile_rows != 0:
        row = (jax.lax.broadcasted_iota(jnp.int32, (tr, 1), 0)
               + pl.program_id(0) * tile_rows)
        row_total = jnp.where(row < num_packed_rows, row_total, 0.0)

    out_ref[...] = jnp.broadcast_to(jnp.sum(row_total), (8, 128))


def _pick_tile_rows(num_rows, row_elems, requested):
    if requested is not None:
        tr = max(8, (int(requested) // 8) * 8)
    else:
        tr = max(8, (_TARGET_BLOCK_ELEMS // max(int(row_elems), 1)) // 8 * 8)
        # At least two grid steps when possible so both v7x TensorCores get work.
        half = ((num_rows + 1) // 2 + 7) // 8 * 8
        tr = min(tr, max(8, half))
    return min(tr, ((num_rows + 7) // 8) * 8)


def focal_loss_label_sigmoid(inputs, targets, *, num_classes, epsilon=0.0,
                             gamma=5.0, gamma_p=1.0, alpha=10.0,
                             tile_rows=None, approx_reciprocal=True):
    """JAX/Pallas equivalent of FocalLossLabelSigmoid.forward.

    inputs:  (B, num_classes) logits, streamed in their native dtype (e.g. bf16).
    targets: (B,) integer class labels.
    returns: scalar float32 loss.

    `epsilon` (label smoothing) is accepted but unused, exactly like the reference
    forward.  `approx_reciprocal=True` uses the approximate EUP reciprocal for
    1/(1 + e^-|x|) (small relative error); pass False for reference-accurate math.
    """
    b, c = inputs.shape
    assert c == num_classes, (c, num_classes)
    targets = jnp.reshape(targets, (-1,)).astype(jnp.int32)
    assert targets.shape[0] == b, (targets.shape, b)

    common = dict(gamma=float(gamma), gamma_p=float(gamma_p), alpha=float(alpha),
                  batch=b, num_classes=c, approx_recip=bool(approx_reciprocal))

    lane_packed = (8 <= c < 128 and 128 % c == 0 and (b * c) % 128 == 0)
    if lane_packed:
        # Free row-major view: every lane of every vreg holds a useful logit.
        groups = 128 // c
        num_rows = (b * c) // 128
        x2d = jnp.reshape(inputs, (num_rows, 128))
        t2d = jnp.reshape(targets, (num_rows, groups))
    else:
        num_rows = b
        x2d = inputs                                 # native dtype, no pad/astype
        t2d = jnp.reshape(targets, (b, 1))

    tr = _pick_tile_rows(num_rows, x2d.shape[1], tile_rows)
    num_tiles = pl.cdiv(num_rows, tr)

    if lane_packed:
        kernel = functools.partial(_focal_lanepacked_kernel,
                                   num_packed_rows=num_rows, tile_rows=tr, **common)
    else:
        kernel = functools.partial(_focal_rowtile_kernel, tile_rows=tr, **common)

    partials = pl.pallas_call(
        kernel,
        out_shape=jax.ShapeDtypeStruct((num_tiles * 8, 128), jnp.float32),
        grid=(num_tiles,),
        in_specs=[
            pl.BlockSpec((tr, x2d.shape[1]), lambda i: (i, 0)),
            pl.BlockSpec((tr, t2d.shape[1]), lambda i: (i, 0)),
        ],
        out_specs=pl.BlockSpec((8, 128), lambda i: (i, 0)),
        compiler_params=pltpu.CompilerParams(
            dimension_semantics=("parallel",),
            vmem_limit_bytes=_VMEM_LIMIT_BYTES),
    )(x2d, t2d)

    # Each grid step filled its lane-dense (8, 128) output block with its partial
    # sum; pick one element per block and reduce the num_tiles values on the host.
    return jnp.sum(partials[::8, 0])
    # TODO(synk): the reference module's tensorboard writer.add_scalar calls are
    # host-side side effects with no Pallas equivalent; callers can log the loss.


def _reference(inputs, targets, *, gamma=5.0, gamma_p=1.0, alpha=10.0):
    """Direct transliteration of the PyTorch forward (naive formulas)."""
    probs = jax.nn.sigmoid(inputs.astype(jnp.float32))
    tgt = jax.nn.one_hot(targets, inputs.shape[1], dtype=jnp.float32)
    pt_p = probs * tgt
    pt_n = (1.0 - probs) * (1.0 - tgt)
    ww_p = -jnp.power(1.0 - pt_p, gamma_p)
    ww_n = -jnp.power(1.0 - pt_n, gamma)
    fl_p = ww_p * jnp.log(probs) * tgt * alpha * 0.1
    fl_n = ww_n * jnp.log(1.0 - probs) * (1.0 - tgt) * 10.0
    return fl_p.mean(0).sum() + fl_n.mean()


if __name__ == "__main__":
    key = jax.random.PRNGKey(0)
    k1, k2, k3, k4, k5, k6 = jax.random.split(key, 6)

    # Case 1: lane-packed path (128 % C == 0), exact reciprocal, tight check.
    b1, c1 = 16, 16
    x1 = jax.random.normal(k1, (b1, c1), dtype=jnp.float32)
    t1 = jax.random.randint(k2, (b1,), 0, c1, dtype=jnp.int32)
    loss1 = focal_loss_label_sigmoid(x1, t1, num_classes=c1,
                                     approx_reciprocal=False)
    jax.block_until_ready(loss1)
    ref1 = _reference(x1, t1)
    assert jnp.allclose(loss1, ref1, rtol=1e-4, atol=1e-5), (loss1, ref1)

    # Case 2: row-tiled fallback (C does not divide 128), ragged trailing tile,
    # explicit small tile_rows, exact reciprocal, tight check.
    b2, c2 = 20, 20
    x2 = jax.random.normal(k3, (b2, c2), dtype=jnp.float32)
    t2 = jax.random.randint(k4, (b2,), 0, c2, dtype=jnp.int32)
    loss2 = focal_loss_label_sigmoid(x2, t2, num_classes=c2, tile_rows=8,
                                     approx_reciprocal=False)
    jax.block_until_ready(loss2)
    ref2 = _reference(x2, t2)
    assert jnp.allclose(loss2, ref2, rtol=1e-4, atol=1e-5), (loss2, ref2)

    # Case 3: lane-packed path streaming bf16 natively, ragged packed tail, and the
    # default approximate EUP reciprocal (validated at a looser tolerance).
    b3, c3 = 80, 16
    x3 = jax.random.normal(k5, (b3, c3), dtype=jnp.float32).astype(jnp.bfloat16)
    t3 = jax.random.randint(k6, (b3,), 0, c3, dtype=jnp.int32)
    loss3 = focal_loss_label_sigmoid(x3, t3, num_classes=c3)
    jax.block_until_ready(loss3)
    ref3 = _reference(x3, t3)
    assert jnp.allclose(loss3, ref3, rtol=5e-2, atol=1e-3), (loss3, ref3)

    print("KERNEL_OK")
</pallas_src>

<mosaic_0001>
module attributes {stable_mosaic.version = 11 : i64} {
  func.func @_focal_lanepacked_kernel(%arg0: i32, %arg1: memref<8x128xf32, #tpu.memory_space<vmem>>, %arg2: memref<8x8xi32, #tpu.memory_space<vmem>>, %arg3: memref<8x128xf32, #tpu.memory_space<vmem>>) attributes {dimension_semantics = [#tpu.dimension_semantics<parallel>], iteration_bounds = array<i64: 1>, scalar_prefetch = 0 : i64, scratch_operands = 0 : i64, tpu.core_type = #tpu.core_type<tc>, window_params = [{transform_indices = @transform_0, window_bounds = array<i64: 8, 128>}, {transform_indices = @transform_1, window_bounds = array<i64: 8, 8>}, {transform_indices = @transform_2, window_bounds = array<i64: 8, 128>}]} {
    %c0 = arith.constant 0 : index
    %c0_0 = arith.constant 0 : index
    %0 = vector.load %arg1[%c0, %c0_0] : memref<8x128xf32, #tpu.memory_space<vmem>>, vector<8x128xf32>
    %c0_1 = arith.constant 0 : index
    %c0_2 = arith.constant 0 : index
    %1 = vector.load %arg2[%c0_1, %c0_2] : memref<8x8xi32, #tpu.memory_space<vmem>>, vector<8x8xi32>
    %2 = tpu.iota {dimensions = array<i32: 1>} : vector<8x128xi32>
    %c4_i32 = arith.constant 4 : i32
    %3 = vector.broadcast %c4_i32 : i32 to vector<8x128xi32>
    %4 = arith.shrsi %2, %3 : vector<8x128xi32>
    %c15_i32 = arith.constant 15 : i32
    %5 = vector.broadcast %c15_i32 : i32 to vector<8x128xi32>
    %6 = arith.andi %2, %5 : vector<8x128xi32>
    %c0_i32 = arith.constant 0 : i32
    %7 = vector.broadcast %c0_i32 : i32 to vector<8x128xi32>
    %8 = arith.cmpi eq, %4, %7 : vector<8x128xi32>
    %9 = vector.extract_strided_slice %1 {offsets = [0, 0], sizes = [8, 1], strides = [1, 1]} : vector<8x8xi32> to vector<8x1xi32>
    %c0_i32_3 = arith.constant 0 : i32
    %10 = vector.shape_cast %9 : vector<8x1xi32> to vector<8x1xi32>
    %11 = vector.broadcast %10 : vector<8x1xi32> to vector<8x128xi32>
    %12 = vector.broadcast %c0_i32_3 : i32 to vector<8x128xi32>
    %13 = arith.select %8, %11, %12 : vector<8x128xi1>, vector<8x128xi32>
    %c1_i32 = arith.constant 1 : i32
    %14 = vector.broadcast %c1_i32 : i32 to vector<8x128xi32>
    %15 = arith.cmpi eq, %4, %14 : vector<8x128xi32>
    %16 = vector.extract_strided_slice %1 {offsets = [0, 1], sizes = [8, 1], strides = [1, 1]} : vector<8x8xi32> to vector<8x1xi32>
    %17 = vector.shape_cast %16 : vector<8x1xi32> to vector<8x1xi32>
    %18 = vector.broadcast %17 : vector<8x1xi32> to vector<8x128xi32>
    %19 = arith.select %15, %18, %13 : vector<8x128xi1>, vector<8x128xi32>
    %c2_i32 = arith.constant 2 : i32
    %20 = vector.broadcast %c2_i32 : i32 to vector<8x128xi32>
    %21 = arith.cmpi eq, %4, %20 : vector<8x128xi32>
    %22 = vector.extract_strided_slice %1 {offsets = [0, 2], sizes = [8, 1], strides = [1, 1]} : vector<8x8xi32> to vector<8x1xi32>
    %23 = vector.shape_cast %22 : vector<8x1xi32> to vector<8x1xi32>
    %24 = vector.broadcast %23 : vector<8x1xi32> to vector<8x128xi32>
    %25 = arith.select %21, %24, %19 : vector<8x128xi1>, vector<8x128xi32>
    %c3_i32 = arith.constant 3 : i32
    %26 = vector.broadcast %c3_i32 : i32 to vector<8x128xi32>
    %27 = arith.cmpi eq, %4, %26 : vector<8x128xi32>
    %28 = vector.extract_strided_slice %1 {offsets = [0, 3], sizes = [8, 1], strides = [1, 1]} : vector<8x8xi32> to vector<8x1xi32>
    %29 = vector.shape_cast %28 : vector<8x1xi32> to vector<8x1xi32>
    %30 = vector.broadcast %29 : vector<8x1xi32> to vector<8x128xi32>
    %31 = arith.select %27, %30, %25 : vector<8x128xi1>, vector<8x128xi32>
    %c4_i32_4 = arith.constant 4 : i32
    %32 = vector.broadcast %c4_i32_4 : i32 to vector<8x128xi32>
    %33 = arith.cmpi eq, %4, %32 : vector<8x128xi32>
    %34 = vector.extract_strided_slice %1 {offsets = [0, 4], sizes = [8, 1], strides = [1, 1]} : vector<8x8xi32> to vector<8x1xi32>
    %35 = vector.shape_cast %34 : vector<8x1xi32> to vector<8x1xi32>
    %36 = vector.broadcast %35 : vector<8x1xi32> to vector<8x128xi32>
    %37 = arith.select %33, %36, %31 : vector<8x128xi1>, vector<8x128xi32>
    %c5_i32 = arith.constant 5 : i32
    %38 = vector.broadcast %c5_i32 : i32 to vector<8x128xi32>
    %39 = arith.cmpi eq, %4, %38 : vector<8x128xi32>
    %40 = vector.extract_strided_slice %1 {offsets = [0, 5], sizes = [8, 1], strides = [1, 1]} : vector<8x8xi32> to vector<8x1xi32>
    %41 = vector.shape_cast %40 : vector<8x1xi32> to vector<8x1xi32>
    %42 = vector.broadcast %41 : vector<8x1xi32> to vector<8x128xi32>
    %43 = arith.select %39, %42, %37 : vector<8x128xi1>, vector<8x128xi32>
    %c6_i32 = arith.constant 6 : i32
    %44 = vector.broadcast %c6_i32 : i32 to vector<8x128xi32>
    %45 = arith.cmpi eq, %4, %44 : vector<8x128xi32>
    %46 = vector.extract_strided_slice %1 {offsets = [0, 6], sizes = [8, 1], strides = [1, 1]} : vector<8x8xi32> to vector<8x1xi32>
    %47 = vector.shape_cast %46 : vector<8x1xi32> to vector<8x1xi32>
    %48 = vector.broadcast %47 : vector<8x1xi32> to vector<8x128xi32>
    %49 = arith.select %45, %48, %43 : vector<8x128xi1>, vector<8x128xi32>
    %c7_i32 = arith.constant 7 : i32
    %50 = vector.broadcast %c7_i32 : i32 to vector<8x128xi32>
    %51 = arith.cmpi eq, %4, %50 : vector<8x128xi32>
    %52 = vector.extract_strided_slice %1 {offsets = [0, 7], sizes = [8, 1], strides = [1, 1]} : vector<8x8xi32> to vector<8x1xi32>
    %53 = vector.shape_cast %52 : vector<8x1xi32> to vector<8x1xi32>
    %54 = vector.broadcast %53 : vector<8x1xi32> to vector<8x128xi32>
    %55 = arith.select %51, %54, %49 : vector<8x128xi1>, vector<8x128xi32>
    %56 = arith.cmpi eq, %6, %55 : vector<8x128xi32>
    %57 = math.absf %0 : vector<8x128xf32>
    %cst = arith.constant 0.000000e+00 : f32
    %58 = vector.broadcast %cst : f32 to vector<8x128xf32>
    %59 = arith.subf %58, %57 : vector<8x128xf32>
    %60 = math.exp %59 : vector<8x128xf32>
    %cst_5 = arith.constant 1.000000e+00 : f32
    %61 = vector.broadcast %cst_5 : f32 to vector<8x128xf32>
    %62 = arith.addf %61, %60 : vector<8x128xf32>
    %cst_6 = arith.constant 1.000000e+00 : f32
    %63 = vector.broadcast %cst_6 : f32 to vector<8x128xf32>
    %64 = arith.divf %63, %62 : vector<8x128xf32>
    %65 = arith.mulf %60, %64 : vector<8x128xf32>
    %cst_7 = arith.constant 0.000000e+00 : f32
    %66 = vector.broadcast %cst_7 : f32 to vector<8x128xf32>
    %67 = arith.cmpf oge, %0, %66 : vector<8x128xf32>
    %68 = arith.select %67, %64, %65 : vector<8x128xi1>, vector<8x128xf32>
    %cst_8 = arith.constant 0.000000e+00 : f32
    %69 = vector.broadcast %cst_8 : f32 to vector<8x128xf32>
    %70 = arith.cmpf oge, %0, %69 : vector<8x128xf32>
    %71 = arith.select %70, %65, %64 : vector<8x128xi1>, vector<8x128xf32>
    %72 = math.log %62 : vector<8x128xf32>
    %cst_9 = arith.constant 0.000000e+00 : f32
    %73 = vector.broadcast %cst_9 : f32 to vector<8x128xf32>
    %74 = arith.maximumf %0, %73 : vector<8x128xf32>
    %75 = arith.addf %72, %74 : vector<8x128xf32>
    %cst_10 = arith.constant 0.000000e+00 : f32
    %76 = vector.broadcast %cst_10 : f32 to vector<8x128xf32>
    %77 = arith.subf %76, %0 : vector<8x128xf32>
    %cst_11 = arith.constant 0.000000e+00 : f32
    %78 = vector.broadcast %cst_11 : f32 to vector<8x128xf32>
    %79 = arith.maximumf %77, %78 : vector<8x128xf32>
    %80 = arith.addf %72, %79 : vector<8x128xf32>
    %81 = arith.mulf %68, %68 : vector<8x128xf32>
    %82 = arith.mulf %81, %81 : vector<8x128xf32>
    %83 = arith.mulf %68, %82 : vector<8x128xf32>
    %84 = arith.mulf %83, %75 : vector<8x128xf32>
    %cst_12 = arith.constant 3.906250e-02 : f32
    %85 = vector.broadcast %cst_12 : f32 to vector<8x128xf32>
    %86 = arith.mulf %84, %85 : vector<8x128xf32>
    %87 = arith.mulf %71, %80 : vector<8x128xf32>
    %cst_13 = arith.constant 6.250000e-02 : f32
    %88 = vector.broadcast %cst_13 : f32 to vector<8x128xf32>
    %89 = arith.mulf %87, %88 : vector<8x128xf32>
    %90 = arith.select %56, %89, %86 : vector<8x128xi1>, vector<8x128xf32>
    %cst_14 = arith.constant dense<0.000000e+00> : vector<8xf32>
    %91 = vector.multi_reduction <add>, %90, %cst_14 [1] : vector<8x128xf32> to vector<8xf32>
    %92 = vector.shape_cast %91 : vector<8xf32> to vector<8x1xf32>
    %93 = tpu.iota {dimensions = array<i32: 0>} : vector<8x1xi32>
    %c8_i32 = arith.constant 8 : i32
    %94 = arith.muli %arg0, %c8_i32 : i32
    %95 = vector.broadcast %94 : i32 to vector<8x1xi32>
    %96 = arith.addi %93, %95 : vector<8x1xi32>
    %c2_i32_15 = arith.constant 2 : i32
    %97 = vector.broadcast %c2_i32_15 : i32 to vector<8x1xi32>
    %98 = arith.cmpi slt, %96, %97 : vector<8x1xi32>
    %cst_16 = arith.constant 0.000000e+00 : f32
    %99 = vector.broadcast %cst_16 : f32 to vector<8x1xf32>
    %100 = arith.select %98, %92, %99 : vector<8x1xi1>, vector<8x1xf32>
    %101 = vector.shape_cast %100 : vector<8x1xf32> to vector<1x8x1xf32>
    %cst_17 = arith.constant dense<0.000000e+00> : vector<1xf32>
    %102 = vector.multi_reduction <add>, %101, %cst_17 [1, 2] : vector<1x8x1xf32> to vector<1xf32>
    %103 = vector.shape_cast %102 : vector<1xf32> to vector<1x1x1xf32>
    %104 = vector.extract %103[0, 0, 0] : f32 from vector<1x1x1xf32>
    %105 = vector.broadcast %104 : f32 to vector<8x128xf32>
    %c0_18 = arith.constant 0 : index
    %c0_19 = arith.constant 0 : index
    %106 = vector.load %arg3[%c0_18, %c0_19] : memref<8x128xf32, #tpu.memory_space<vmem>>, vector<8x128xf32>
    tpu.vector_store %arg3[%c0_18, %c0_19], %105 {strides = array<i32>} : memref<8x128xf32, #tpu.memory_space<vmem>>, vector<8x128xf32>,
    return
  }
  func.func @transform_0(%arg0: i32) -> (i32, i32) {
    %c0_i32 = arith.constant 0 : i32
    %c0_i32_0 = arith.constant 0 : i32
    return %arg0, %c0_i32 : i32, i32
  }
  func.func @transform_1(%arg0: i32) -> (i32, i32) {
    %c0_i32 = arith.constant 0 : i32
    %c0_i32_0 = arith.constant 0 : i32
    return %arg0, %c0_i32 : i32, i32
  }
  func.func @transform_2(%arg0: i32) -> (i32, i32) {
    %c0_i32 = arith.constant 0 : i32
    %c0_i32_0 = arith.constant 0 : i32
    return %arg0, %c0_i32 : i32, i32
  }
}

</mosaic_0001>

<llo_original>
// kernel: tpu_custom_call.1
$region0: #{tpu_custom_call.1}
  #allocation0 [shape = 'u32[]', space=smem, size = 0x4, offset = 0x4, fixed_abs, tag = 'smem constant byte address 0x4 - core index']
  #allocation1 [shape = 'u32[144,128]{1,0:T(1,128)}', space=vmem, size = 0x12000, scoped, tag = 'internal scratch']
  %s0 = inlined_call_operand.hbm [shape: f32[2,128], index: 0, kind: input, shape index: {}]
  %s1 = inlined_call_operand.vmem [shape: s32[2,8], index: 1, kind: input, shape index: {}]
  %s2 = inlined_call_operand.hbm [shape: f32[8,128], index: 2, kind: output, shape index: {}]
  %s3 = sld [smem:[#allocation0]]
  $region22: #{tpu_custom_call.1} parent=0
    _
  %s5 = ssub.s32 1, %s3
  %s6 = scalar_select 0, %s5, %s3
  $region1: #{tpu_custom_call.1} parent=0
    #allocation2 [shape = 'u8[4096]{0}', space=vmem, size = 0x1000, scoped, tag = 'input window, operand 0, single buffered']
    #allocation3 [shape = 's32[1]{0}', space=sflag, size = 0x4, scoped, tag = 'scoped memory for tpu_custom_call.1']
    #allocation4 [shape = 's32[1]{0}', space=sflag, size = 0x4, scoped, tag = 'scoped memory for tpu_custom_call.1']
    #allocation5 [shape = 'u8[4096]{0}', space=vmem, size = 0x1000, scoped, tag = 'output window, operand 0, single buffered']
    %7 = vsyncpa [#allocation3], 0
    %8 = vsyncpa [#allocation4], 0
    // Predicated region
    $region2: #{tpu_custom_call.1} parent=1 // pred_check
      _
    $region3: #{tpu_custom_call.1} parent=1 // pred_check_branch
      %10 = sbr.rel (0) target = $region5
    $region4: #{tpu_custom_call.1} parent=1 // pred_region
      %s12 = ssub.s32 128, 32
      %13 = vsyncadd [#allocation3], %s12
      %s14 = sshll.u32 [#allocation2], 4
      %s15 = int_to_ptr.vmem [resolvable:$true] %s14
      %20 = dma.hbm_to_vmem [thread:$0]  %s0, 32, %s15, [#allocation3], 32, 32, 2
    $region5: #{tpu_custom_call.1} parent=1 // pred_fallthru
      _
    // Predicated region
    $region6: #{tpu_custom_call.1} parent=1 // pred_check
      _
    $region7: #{tpu_custom_call.1} parent=1 // pred_check_branch
      %22 = sbr.rel (0) target = $region9
    $region8: #{tpu_custom_call.1} parent=1 // pred_region
      _
    $region9: #{tpu_custom_call.1} parent=1 // pred_fallthru
      _
    // Predicated region
    $region10: #{tpu_custom_call.1} parent=1 // pred_check
      _
    $region11: #{tpu_custom_call.1} parent=1 // pred_check_branch
      %24 = sbr.rel (0) target = $region13
    $region12: #{tpu_custom_call.1} parent=1 // pred_region
      %25 = dma.done [#allocation3], 128
    $region13: #{tpu_custom_call.1} parent=1 // pred_fallthru
      _
    %v26 = vld [vmem:[#allocation2] sm:$0xff]
    %v27 = vld [vmem:[%s1] sm:$0xff]
    %v28 = vlaneseq
    %v29 = vand.u32 %v28, 127
    %v30 = vshra.s32 %v29, 4
    %v31 = vand.u32 %v29, 15
    %vm32 = vcmp.eq.s32.totalorder %v30, 0
    %33 = vset.pattern.permute.xlu0 0
    %34 = vperm.xlu0 %33, %v27
    %v35 = vpop.permute.xlu0 %34
    %v36 = vsel %vm32, %v35, 0
    %vm37 = vcmp.eq.s32.totalorder %v30, 1
    %38 = vset.pattern.permute.xlu0 1
    %39 = vperm.xlu0 %38, %v27
    %v40 = vpop.permute.xlu0 %39
    %v41 = vsel %vm37, %v40, %v36
    %vm42 = vcmp.eq.s32.totalorder %v30, 2
    %43 = vset.pattern.permute.xlu0 2
    %44 = vperm.xlu0 %43, %v27
    %v45 = vpop.permute.xlu0 %44
    %v46 = vsel %vm42, %v45, %v41
    %vm47 = vcmp.eq.s32.totalorder %v30, 3
    %48 = vset.pattern.permute.xlu0 3
    %49 = vperm.xlu0 %48, %v27
    %v50 = vpop.permute.xlu0 %49
    %v51 = vsel %vm47, %v50, %v46
    %vm52 = vcmp.eq.s32.totalorder %v30, 4
    %53 = vset.pattern.permute.xlu0 4
    %54 = vperm.xlu0 %53, %v27
    %v55 = vpop.permute.xlu0 %54
    %v56 = vsel %vm52, %v55, %v51
    %vm57 = vcmp.eq.s32.totalorder %v30, 5
    %58 = vset.pattern.permute.xlu0 5
    %59 = vperm.xlu0 %58, %v27
    %v60 = vpop.permute.xlu0 %59
    %v61 = vsel %vm57, %v60, %v56
    %vm62 = vcmp.eq.s32.totalorder %v30, 6
    %63 = vset.pattern.permute.xlu0 6
    %64 = vperm.xlu0 %63, %v27
    %v65 = vpop.permute.xlu0 %64
    %v66 = vsel %vm62, %v65, %v61
    %vm67 = vcmp.eq.s32.totalorder %v30, 7
    %68 = vset.pattern.permute.xlu0 7
    %69 = vperm.xlu0 %68, %v27
    %v70 = vpop.permute.xlu0 %69
    %v71 = vsel %vm67, %v70, %v66
    %vm72 = vcmp.eq.s32.totalorder %v31, %v71
    %v73 = vand.u32 2147483647, %v26
    %v74 = vsub.f32 0.0, %v73
    %v75 = vmul.f32 %v74, 1.442695
    %v76 = vpow.pop %v75
    %v77 = vadd.f32 %v76, 1.0
    %v78 = vrcp.pop %v77
    %v79 = vmul.f32 1.0, %v78
    %v80 = vmul.f32 %v76, %v79
    %vm81 = vcmp.ge.f32.partialorder %v26, 0.0
    %v82 = vsel %vm81, %v79, %v80
    %v83 = vsel %vm81, %v80, %v79
    %v84 = vlog2.pop %v77
    %v85 = vmul.f32 %v84, 0.6931472
    %v86 = vmax.f32 %v26, 0.0
    %v87 = vadd.f32 %v85, %v86
    %v88 = vsub.f32 0.0, %v26
    %v89 = vmax.f32 %v88, 0.0
    %v90 = vadd.f32 %v85, %v89
    %v91 = vmul.f32 %v82, %v82
    %v92 = vmul.f32 %v91, %v91
    %v93 = vmul.f32 %v82, %v92
    %v94 = vmul.f32 %v93, %v87
    %v95 = vmul.f32 %v94, 0.0390625
    %v96 = vmul.f32 %v83, %v90
    %v97 = vmul.f32 %v96, 0.0625
    %v98 = vsel %vm72, %v97, %v95
    %99 = vadd.xlane.f32.xlu0 %v98
    %v100 = vpop.xlane.xlu0 %99
    %v101 = vlaneseq
    %v102 = vshrl.u32 %v101, 7
    %s103 = smul.u32 0, 8
    %v104 = vstv %s103
    %v105 = vadd.s32 %v102, %v104
    %vm106 = vcmp.lt.s32.totalorder %v105, 2
    %v107 = vsel %vm106, %v100, 0.0
    %vm108 = vcmask 7168
    %v109 = vsel %vm108, %v107, 0.0
    %110 = vadd.xlane.f32.xlu0 %v109
    %v111 = vpop.xlane.xlu0 %110
    %v112 = vrot.slane %v111, 4
    %v113 = vadd.f32 %v111, %v112
    %v114 = vrot.slane %v113, 2
    %v115 = vadd.f32 %v113, %v114
    %v116 = vrot.slane %v115, 1
    %v117 = vadd.f32 %v115, %v116
    %s118 = vtos %v117
    %v119 = vstv %s118
    %120 = vst [vmem:[#allocation5] sm:$0xff] %v119
    // Predicated region
    $region14: #{tpu_custom_call.1} parent=1 // pred_check
      _
    $region15: #{tpu_custom_call.1} parent=1 // pred_check_branch
      %122 = sbr.rel (0) target = $region17
    $region16: #{tpu_custom_call.1} parent=1 // pred_region
      %s124 = ssub.s32 128, 128
      %125 = vsyncadd [#allocation4], %s124
      %s127 = sshll.u32 [#allocation5], 4
      %s128 = int_to_ptr.vmem [resolvable:$true] %s127
      %130 = dma.vmem_to_hbm [thread:$0]  %s128, 128, %s2, [#allocation4]
    $region17: #{tpu_custom_call.1} parent=1 // pred_fallthru
      _
    // Predicated region
    $region18: #{tpu_custom_call.1} parent=1 // pred_check
      _
    $region19: #{tpu_custom_call.1} parent=1 // pred_check_branch
      %132 = sbr.rel (0) target = $region21
    $region20: #{tpu_custom_call.1} parent=1 // pred_region
      %133 = dma.done [#allocation4], 128
    $region21: #{tpu_custom_call.1} parent=1 // pred_fallthru
      _
    %134 = vsyncpa [#allocation3], 1
    %135 = vsyncpa [#allocation4], 1

</llo_original>
